<compile_context>
chip_gen: v7x
topology: tpu7x:2x2x1
jax: 0.10.0
libtpu: 0.0.40
codegen_flags: <defaults>
</compile_context>

<pallas_src>
import functools

import jax
import jax.numpy as jnp
from jax import lax
from jax.experimental import pallas as pl
from jax.experimental.pallas import tpu as pltpu

_LANES = 128
_MAX_BLOCK_ROWS = 4096   # (4096, 128) f32 block = 2 MiB/input; 8 MiB double-buffered
_STRIP_ROWS = 256        # in-kernel streaming-reduce strip (128 KiB of f32)


def _charbonnier_kernel(x_ref, y_ref, out_ref, *, eps, n_elems, block_rows,
                        strip_rows, steps, needs_mask):
    # x_ref, y_ref: (block_rows, 128) VMEM tiles in their native dtype.
    # out_ref:      (8, 128) f32 partial-sum block, resident across grid axis 1.
    p = pl.program_id(0)
    i = pl.program_id(1)

    @pl.when(i == 0)
    def _():
        out_ref[...] = jnp.zeros_like(out_ref)

    block_start = (p * steps + i) * (block_rows * _LANES)
    num_strips = block_rows // strip_rows

    def strip_sum(s):
        r0 = pl.multiple_of(s * strip_rows, strip_rows)
        xs = x_ref[pl.ds(r0, strip_rows), :].astype(jnp.float32)
        ys = y_ref[pl.ds(r0, strip_rows), :].astype(jnp.float32)
        d = xs - ys
        v = jnp.sqrt(d * d + jnp.float32(eps))
        if needs_mask:
            # Flat element index of every slot in this strip; anything >= n_elems is
            # either lane padding or undefined partial-block data -> select 0.
            row = lax.broadcasted_iota(jnp.int32, (strip_rows, _LANES), 0)
            col = lax.broadcasted_iota(jnp.int32, (strip_rows, _LANES), 1)
            flat = block_start + (r0 + row) * _LANES + col
            v = jnp.where(flat < n_elems, v, jnp.float32(0.0))
        # (strip, 128) -> (strip//8, 8, 128); sum over axis 0 is plain vreg adds (VPU).
        return jnp.sum(v.reshape(strip_rows // 8, 8, _LANES), axis=0)

    if num_strips == 1:
        out_ref[...] += strip_sum(0)
    else:
        acc = lax.fori_loop(0, num_strips,
                            lambda s, a: a + strip_sum(s),
                            jnp.zeros((8, _LANES), jnp.float32))
        out_ref[...] += acc


def charbonnier_loss(x, y, eps=1e-6):
    """Pallas equivalent of CharbonnierLoss().forward(x, y) -> scalar (sum reduction)."""
    assert x.shape == y.shape, "x and y must have the same shape"
    n = x.size  # static Python int at trace time
    if n == 0:
        return jnp.float32(0.0)

    xf = x.reshape(-1)
    yf = y.reshape(-1)

    rem = n % _LANES
    if rem:
        # TODO(synk): lane-alignment pad copies the arrays; only taken when the total
        # element count is not a multiple of 128 (rare for image batches).  Padded
        # slots are masked out inside the kernel, so no correction term is needed.
        pad = _LANES - rem
        xf = jnp.pad(xf, (0, pad))
        yf = jnp.pad(yf, (0, pad))
    total_rows = xf.size // _LANES

    # Sublane-packing multiple for the native dtypes: f32 -> 8, bf16 -> 16, int8 -> 32.
    packing = max(8,
                  32 // jnp.dtype(xf.dtype).itemsize,
                  32 // jnp.dtype(yf.dtype).itemsize)

    if total_rows >= _MAX_BLOCK_ROWS:
        block_rows = _MAX_BLOCK_ROWS
    else:
        block_rows = max(packing, ((total_rows + packing - 1) // packing) * packing)
    block_elems = block_rows * _LANES

    total_tiles = pl.cdiv(total_rows, block_rows)
    # Megacore split only when it costs nothing (even tile count, >= 2 tiles).
    num_parallel = 2 if (total_tiles >= 2 and total_tiles % 2 == 0) else 1
    steps = total_tiles // num_parallel

    # Mask only needed when the last block is partial (ragged rows or lane padding).
    needs_mask = (n % block_elems) != 0

    if block_rows > _STRIP_ROWS and block_rows % _STRIP_ROWS == 0:
        strip_rows = _STRIP_ROWS
    else:
        strip_rows = block_rows

    x2d = xf.reshape(total_rows, _LANES)
    y2d = yf.reshape(total_rows, _LANES)

    in_map = lambda p, i: (p * steps + i, 0)   # noqa: E731  (steps is static)
    out_map = lambda p, i: (p, 0)              # noqa: E731

    kernel = functools.partial(
        _charbonnier_kernel, eps=float(eps), n_elems=n, block_rows=block_rows,
        strip_rows=strip_rows, steps=steps, needs_mask=needs_mask)

    bytes_accessed = (n * jnp.dtype(x.dtype).itemsize
                      + n * jnp.dtype(y.dtype).itemsize
                      + num_parallel * 8 * _LANES * 4)
    cost = pl.CostEstimate(flops=5 * n, transcendentals=n,
                           bytes_accessed=bytes_accessed)

    partials = pl.pallas_call(
        kernel,
        out_shape=jax.ShapeDtypeStruct((num_parallel * 8, _LANES), jnp.float32),
        grid_spec=pltpu.PrefetchScalarGridSpec(
            num_scalar_prefetch=0,
            grid=(num_parallel, steps),
            in_specs=[
                pl.BlockSpec((block_rows, _LANES), in_map),
                pl.BlockSpec((block_rows, _LANES), in_map),
            ],
            out_specs=pl.BlockSpec((8, _LANES), out_map),
        ),
        compiler_params=pltpu.CompilerParams(
            dimension_semantics=("parallel", "arbitrary"),
        ),
        cost_estimate=cost,
    )(x2d, y2d)

    return jnp.sum(partials)


if __name__ == "__main__":
    key = jax.random.PRNGKey(0)
    kx, ky = jax.random.split(key)

    # NCHW, small shapes consistent with a typical image-restoration batch.
    x = jax.random.normal(kx, (2, 4, 16, 16), dtype=jnp.float32)
    y = jax.random.normal(ky, (2, 4, 16, 16), dtype=jnp.float32)

    loss = jax.block_until_ready(charbonnier_loss(x, y, eps=1e-6))
    diff = x - y
    ref = jnp.sum(jnp.sqrt(diff * diff + 1e-6))
    assert jnp.allclose(loss, ref, rtol=1e-4, atol=1e-3), (loss, ref)

    # Ragged case (n not a multiple of 128) to exercise the in-kernel tail mask.
    kx2, ky2 = jax.random.split(ky)
    xr = jax.random.normal(kx2, (3, 3, 7, 5), dtype=jnp.float32)
    yr = jax.random.normal(ky2, (3, 3, 7, 5), dtype=jnp.float32)
    loss_r = jax.block_until_ready(charbonnier_loss(xr, yr, eps=1e-6))
    dr = xr - yr
    ref_r = jnp.sum(jnp.sqrt(dr * dr + 1e-6))
    assert jnp.allclose(loss_r, ref_r, rtol=1e-4, atol=1e-3), (loss_r, ref_r)

    print("KERNEL_OK")
</pallas_src>

<mosaic_0001>
module attributes {stable_mosaic.version = 11 : i64} {
  func.func @_charbonnier_kernel(%arg0: i32, %arg1: i32, %arg2: memref<16x128xf32, #tpu.memory_space<vmem>>, %arg3: memref<16x128xf32, #tpu.memory_space<vmem>>, %arg4: memref<8x128xf32, #tpu.memory_space<vmem>>) attributes {dimension_semantics = [#tpu.dimension_semantics<parallel>, #tpu.dimension_semantics<arbitrary>], iteration_bounds = array<i64: 1, 1>, scalar_prefetch = 0 : i64, scratch_operands = 0 : i64, tpu.core_type = #tpu.core_type<tc>, window_params = [{transform_indices = @transform_0, window_bounds = array<i64: 16, 128>}, {transform_indices = @transform_1, window_bounds = array<i64: 16, 128>}, {transform_indices = @transform_2, window_bounds = array<i64: 8, 128>}]} {
    %c0_i32 = arith.constant 0 : i32
    %0 = arith.cmpi eq, %arg1, %c0_i32 : i32
    %1 = arith.extui %0 : i1 to i32
    %c0_i32_0 = arith.constant 0 : i32
    %2 = arith.cmpi ne, %1, %c0_i32_0 : i32
    scf.if %2 {
      %cst_8 = arith.constant 0.000000e+00 : f32
      %18 = vector.broadcast %cst_8 : f32 to vector<8x128xf32>
      %c0_9 = arith.constant 0 : index
      %c0_10 = arith.constant 0 : index
      %19 = vector.load %arg4[%c0_9, %c0_10] : memref<8x128xf32, #tpu.memory_space<vmem>>, vector<8x128xf32>
      tpu.vector_store %arg4[%c0_9, %c0_10], %18 {strides = array<i32>} : memref<8x128xf32, #tpu.memory_space<vmem>>, vector<8x128xf32>,
    } else {
    }
    %c0 = arith.constant 0 : index
    %c0_1 = arith.constant 0 : index
    %3 = vector.load %arg4[%c0, %c0_1] : memref<8x128xf32, #tpu.memory_space<vmem>>, vector<8x128xf32>
    %c0_i32_2 = arith.constant 0 : i32
    %4 = tpu.assume_multiple %c0_i32_2, 16 : i32
    %5 = arith.index_cast %4 : i32 to index
    %c0_3 = arith.constant 0 : index
    %6 = vector.load %arg2[%5, %c0_3] : memref<16x128xf32, #tpu.memory_space<vmem>>, vector<16x128xf32>
    %7 = arith.index_cast %4 : i32 to index
    %c0_4 = arith.constant 0 : index
    %8 = vector.load %arg3[%7, %c0_4] : memref<16x128xf32, #tpu.memory_space<vmem>>, vector<16x128xf32>
    %9 = arith.subf %6, %8 : vector<16x128xf32>
    %10 = arith.mulf %9, %9 : vector<16x128xf32>
    %cst = arith.constant 9.99999997E-7 : f32
    %11 = vector.broadcast %cst : f32 to vector<16x128xf32>
    %12 = arith.addf %10, %11 : vector<16x128xf32>
    %13 = math.sqrt %12 : vector<16x128xf32>
    %14 = vector.shape_cast %13 : vector<16x128xf32> to vector<2x8x128xf32>
    %cst_5 = arith.constant dense<0.000000e+00> : vector<8x128xf32>
    %15 = vector.multi_reduction <add>, %14, %cst_5 [0] : vector<2x8x128xf32> to vector<8x128xf32>
    %16 = arith.addf %3, %15 : vector<8x128xf32>
    %c0_6 = arith.constant 0 : index
    %c0_7 = arith.constant 0 : index
    %17 = vector.load %arg4[%c0_6, %c0_7] : memref<8x128xf32, #tpu.memory_space<vmem>>, vector<8x128xf32>
    tpu.vector_store %arg4[%c0_6, %c0_7], %16 {strides = array<i32>} : memref<8x128xf32, #tpu.memory_space<vmem>>, vector<8x128xf32>,
    return
  }
  func.func @transform_0(%arg0: i32, %arg1: i32) -> (i32, i32) {
    %c1_i32 = arith.constant 1 : i32
    %0 = arith.muli %arg0, %c1_i32 : i32
    %1 = arith.addi %0, %arg1 : i32
    %c0_i32 = arith.constant 0 : i32
    %c0_i32_0 = arith.constant 0 : i32
    return %1, %c0_i32 : i32, i32
  }
  func.func @transform_1(%arg0: i32, %arg1: i32) -> (i32, i32) {
    %c1_i32 = arith.constant 1 : i32
    %0 = arith.muli %arg0, %c1_i32 : i32
    %1 = arith.addi %0, %arg1 : i32
    %c0_i32 = arith.constant 0 : i32
    %c0_i32_0 = arith.constant 0 : i32
    return %1, %c0_i32 : i32, i32
  }
  func.func @transform_2(%arg0: i32, %arg1: i32) -> (i32, i32) {
    %c0_i32 = arith.constant 0 : i32
    %c0_i32_0 = arith.constant 0 : i32
    return %arg0, %c0_i32 : i32, i32
  }
}

</mosaic_0001>

<llo_original>
// kernel: tpu_custom_call.1
$region0: #{tpu_custom_call.1}
  #allocation0 [shape = 'u32[]', space=smem, size = 0x4, offset = 0x4, fixed_abs, tag = 'smem constant byte address 0x4 - core index']
  #allocation1 [shape = 'u32[144,128]{1,0:T(1,128)}', space=vmem, size = 0x12000, scoped, tag = 'internal scratch']
  %s0 = inlined_call_operand.hbm [shape: f32[16,128], index: 0, kind: input, shape index: {}]
  %s1 = inlined_call_operand.hbm [shape: f32[16,128], index: 1, kind: input, shape index: {}]
  %s2 = inlined_call_operand.hbm [shape: f32[8,128], index: 2, kind: output, shape index: {}]
  %s3 = sld [smem:[#allocation0]]
  $region30: #{tpu_custom_call.1} parent=0
    _
  %s5 = ssub.s32 1, %s3
  %s6 = scalar_select 0, %s5, %s3
  $region1: #{tpu_custom_call.1} parent=0
    #allocation2 [shape = 'u8[8192]{0}', space=vmem, size = 0x2000, scoped, tag = 'input window, operand 0, single buffered']
    #allocation3 [shape = 's32[1]{0}', space=sflag, size = 0x4, scoped, tag = 'scoped memory for tpu_custom_call.1']
    #allocation4 [shape = 's32[1]{0}', space=sflag, size = 0x4, scoped, tag = 'scoped memory for tpu_custom_call.1']
    #allocation5 [shape = 'u8[8192]{0}', space=vmem, size = 0x2000, scoped, tag = 'input window, operand 1, single buffered']
    #allocation6 [shape = 's32[1]{0}', space=sflag, size = 0x4, scoped, tag = 'scoped memory for tpu_custom_call.1']
    #allocation7 [shape = 'u8[4096]{0}', space=vmem, size = 0x1000, scoped, tag = 'output window, operand 0, single buffered']
    %7 = vsyncpa [#allocation3], 0
    %8 = vsyncpa [#allocation6], 0
    %9 = vsyncpa [#allocation4], 0
    // Predicated region
    $region2: #{tpu_custom_call.1} parent=1 // pred_check
      _
    $region3: #{tpu_custom_call.1} parent=1 // pred_check_branch
      %11 = sbr.rel (0) target = $region5
    $region4: #{tpu_custom_call.1} parent=1 // pred_region
      %s12 = sadd.s32 0, 0
      %s13 = smul.u32 2, %s12
      %s15 = ssub.s32 256, 256
      %16 = vsyncadd [#allocation3], %s15
      %s17 = smul.addr %s13, 128
      %s18 = scalar_lea.hbm %s0, %s17
      %s19 = sshll.u32 [#allocation2], 4
      %s20 = int_to_ptr.vmem [resolvable:$true] %s19
      %25 = dma.hbm_to_vmem [thread:$0]  %s18, 256, %s20, [#allocation3], 128, 128, 8
    $region5: #{tpu_custom_call.1} parent=1 // pred_fallthru
      _
    // Predicated region
    $region6: #{tpu_custom_call.1} parent=1 // pred_check
      _
    $region7: #{tpu_custom_call.1} parent=1 // pred_check_branch
      %27 = sbr.rel (0) target = $region9
    $region8: #{tpu_custom_call.1} parent=1 // pred_region
      %s28 = sadd.s32 0, 0
      %s29 = smul.u32 2, %s28
      %s31 = ssub.s32 256, 256
      %32 = vsyncadd [#allocation6], %s31
      %s33 = smul.addr %s29, 128
      %s34 = scalar_lea.hbm %s1, %s33
      %s35 = sshll.u32 [#allocation5], 4
      %s36 = int_to_ptr.vmem [resolvable:$true] %s35
      %41 = dma.hbm_to_vmem [thread:$0]  %s34, 256, %s36, [#allocation6], 128, 128, 8
    $region9: #{tpu_custom_call.1} parent=1 // pred_fallthru
      _
    // Predicated region
    $region10: #{tpu_custom_call.1} parent=1 // pred_check
      _
    $region11: #{tpu_custom_call.1} parent=1 // pred_check_branch
      %43 = sbr.rel (0) target = $region13
    $region12: #{tpu_custom_call.1} parent=1 // pred_region
      %44 = dma.done [#allocation3], 256
    $region13: #{tpu_custom_call.1} parent=1 // pred_fallthru
      _
    // Predicated region
    $region14: #{tpu_custom_call.1} parent=1 // pred_check
      _
    $region15: #{tpu_custom_call.1} parent=1 // pred_check_branch
      %46 = sbr.rel (0) target = $region17
    $region16: #{tpu_custom_call.1} parent=1 // pred_region
      %47 = dma.done [#allocation6], 256
    $region17: #{tpu_custom_call.1} parent=1 // pred_fallthru
      _
    %s48 = sadd.s32 0, 0
    %s49 = smul.u32 2, %s48
    %s50 = sadd.s32 0, 0
    %s51 = smul.u32 2, %s50
    %p52 = scmp.eq.s32.totalorder 0, 0
    // Predicated region
    $region18: #{tpu_custom_call.1} parent=1 // pred_check
      %p53 = pneg %p52
    $region19: #{tpu_custom_call.1} parent=1 // pred_check_branch
      %55 = sbr.rel (%p53) target = $region21
    $region20: #{tpu_custom_call.1} parent=1 // pred_region
      %56 = vst [vmem:[#allocation7] sm:$0xff] 0.0
    $region21: #{tpu_custom_call.1} parent=1 // pred_fallthru
      _
    %v57 = vld [vmem:[#allocation7] sm:$0xff]
    %v58 = vld [vmem:[#allocation2] sm:$0xff]
    %v59 = vld [vmem:[#allocation2 + $0x8] sm:$0xff]
    %v60 = vld [vmem:[#allocation5] sm:$0xff]
    %v61 = vld [vmem:[#allocation5 + $0x8] sm:$0xff]
    %v62 = vsub.f32 %v58, %v60
    %v63 = vsub.f32 %v59, %v61
    %v64 = vmul.f32 %v62, %v62
    %v65 = vmul.f32 %v63, %v63
    %v66 = vadd.f32 %v64, 1e-06
    %v67 = vadd.f32 %v65, 1e-06
    %v68 = vrsqrt.pop %v66
    %v69 = vmul.f32 %v66, %v68
    %vm70 = vcmp.eq.f32.partialorder %v66, inf
    %v71 = vsel %vm70, %v66, %v69
    %vm72 = vcmp.eq.f32.partialorder %v66, 0.0
    %v73 = vand.u32 %v66, 2147483648
    %v74 = vsel %vm72, %v73, %v71
    %v75 = vrsqrt.pop %v67
    %v76 = vmul.f32 %v67, %v75
    %vm77 = vcmp.eq.f32.partialorder %v67, inf
    %v78 = vsel %vm77, %v67, %v76
    %vm79 = vcmp.eq.f32.partialorder %v67, 0.0
    %v80 = vand.u32 %v67, 2147483648
    %v81 = vsel %vm79, %v80, %v78
    %v82 = vadd.f32 %v74, %v81
    %v83 = vadd.f32 %v57, %v82
    %84 = vst [vmem:[#allocation7] sm:$0xff] %v83
    // Predicated region
    $region22: #{tpu_custom_call.1} parent=1 // pred_check
      _
    $region23: #{tpu_custom_call.1} parent=1 // pred_check_branch
      %86 = sbr.rel (0) target = $region25
    $region24: #{tpu_custom_call.1} parent=1 // pred_region
      %s88 = ssub.s32 128, 128
      %89 = vsyncadd [#allocation4], %s88
      %s91 = sshll.u32 [#allocation7], 4
      %s92 = int_to_ptr.vmem [resolvable:$true] %s91
      %94 = dma.vmem_to_hbm [thread:$0]  %s92, 128, %s2, [#allocation4]
    $region25: #{tpu_custom_call.1} parent=1 // pred_fallthru
      _
    // Predicated region
    $region26: #{tpu_custom_call.1} parent=1 // pred_check
      _
    $region27: #{tpu_custom_call.1} parent=1 // pred_check_branch
      %96 = sbr.rel (0) target = $region29
    $region28: #{tpu_custom_call.1} parent=1 // pred_region
      %97 = dma.done [#allocation4], 128
    $region29: #{tpu_custom_call.1} parent=1 // pred_fallthru
      _
    %98 = vsyncpa [#allocation3], 1
    %99 = vsyncpa [#allocation6], 1
    %100 = vsyncpa [#allocation4], 1

</llo_original>
